<compile_context>
chip_gen: v7x
topology: tpu7x:2x2x1
jax: 0.10.0
libtpu: 0.0.40
codegen_flags: <defaults>
</compile_context>

<pallas_src>
import jax
import jax.numpy as jnp
from jax.experimental import pallas as pl
from jax.experimental.pallas import tpu as pltpu


# ---------------------------------------------------------------------------
# Small helpers
# ---------------------------------------------------------------------------
def _cdiv(a, b):
    return -(-a // b)


def _round_up(a, m):
    return _cdiv(a, m) * m


def _pad_to(a, axis, size):
    if a.shape[axis] == size:
        return a
    pads = [(0, 0)] * a.ndim
    pads[axis] = (0, size - a.shape[axis])
    return jnp.pad(a, pads)


def _vmem_budget_bytes():
    """Per-generation VMEM budget: ~48 MiB on v7x (64 MiB/TC), ~96 MiB on v5e/v6e."""
    try:
        cap = int(pltpu.get_tpu_info().vmem_capacity_bytes)
    except Exception:  # CPU / interpret / older runtimes: be conservative (v7x-sized).
        cap = 64 * 1024 * 1024
    return min(96 * 1024 * 1024, (cap * 3) // 4)


def _choose_time_tile(t_pad, batch, c_in_p, c_out_p, itemsize, has_bridge,
                      vmem_budget, max_tt=4096, min_steps=4):
    """Largest 128-multiple time tile whose double-buffered tiles fit VMEM.

    Budget = 2 x (x tile + out tile) + 2 x (weights + f32 biases) + ~2 MiB
    slack for compiler scratch. Then shrink (never below 128) until there are
    at least `min_steps` grid steps so both v7x TensorCores stay busy and the
    DMA pipeline has overlap.
    """
    weight_elems = c_out_p * c_in_p + c_out_p * c_out_p
    if has_bridge:
        weight_elems += c_out_p * c_in_p
    fixed = 2 * (weight_elems * itemsize + 2 * c_out_p * 4)
    act_per_col = 2 * (c_in_p + c_out_p) * itemsize           # double-buffered in + out
    budget = max(vmem_budget - fixed - (2 << 20), 128 * act_per_col)
    tt = (budget // act_per_col) // 128 * 128
    tt = int(max(128, min(tt, max_tt, t_pad)))
    while tt > 128 and batch * _cdiv(t_pad, tt) < min_steps:
        tt = max(128, ((tt // 2) // 128) * 128)
    return tt


# ---------------------------------------------------------------------------
# Kernels
# ---------------------------------------------------------------------------
def _resblock_bridge_kernel(x_ref, w1_ref, b1_ref, w2_ref, b2f_ref, wb_ref, o_ref):
    # x: (C_in, TT); w1/wb: (C_out, C_in); w2: (C_out, C_out); biases: (C_out, 1) f32.
    # The bridge bias is pre-fused into b2f (= b2 + bb), so xb carries no bias add.
    x = x_ref[...]
    h = jnp.maximum(x, 0.0)                                                   # ReLU
    h = jnp.dot(w1_ref[...], h, preferred_element_type=jnp.float32) + b1_ref[...]
    h = jnp.maximum(h, 0.0).astype(w2_ref.dtype)                              # ReLU (f32) -> storage dtype
    y = jnp.dot(w2_ref[...], h, preferred_element_type=jnp.float32) + b2f_ref[...]
    xb = jnp.dot(wb_ref[...], x, preferred_element_type=jnp.float32)
    o_ref[...] = (xb + y).astype(o_ref.dtype)


def _resblock_identity_kernel(x_ref, w1_ref, b1_ref, w2_ref, b2_ref, o_ref):
    # Identity bridge: out = x + net(x).  No third matmul, no extra weight DMA.
    x = x_ref[...]
    h = jnp.maximum(x, 0.0)
    h = jnp.dot(w1_ref[...], h, preferred_element_type=jnp.float32) + b1_ref[...]
    h = jnp.maximum(h, 0.0).astype(w2_ref.dtype)
    y = jnp.dot(w2_ref[...], h, preferred_element_type=jnp.float32) + b2_ref[...]
    o_ref[...] = (x.astype(jnp.float32) + y).astype(o_ref.dtype)


# ---------------------------------------------------------------------------
# Parameter handling
# ---------------------------------------------------------------------------
def _weight_norm(v, g):
    # PyTorch weight_norm (dim=0): w[o, i, k] = g[o] * v[o, i, k] / ||v[o]||
    v32 = v.astype(jnp.float32)
    norm = jnp.sqrt(jnp.sum(v32 ** 2, axis=(1, 2), keepdims=True))
    return g.astype(jnp.float32)[:, None, None] * v32 / norm


def init_resblock_params(key, in_channels, out_channels, dtype=jnp.float32):
    """Deterministic synthetic parameters matching the PyTorch module shapes."""
    ks = jax.random.split(key, 6)
    v1 = jax.random.normal(ks[0], (out_channels, in_channels, 1), dtype) * 0.3
    g1 = jnp.sqrt(jnp.sum(v1.astype(jnp.float32) ** 2, axis=(1, 2))).astype(dtype)
    b1 = jax.random.normal(ks[1], (out_channels,), dtype) * 0.1
    v2 = jax.random.normal(ks[2], (out_channels, out_channels, 1), dtype) * 0.3
    g2 = jnp.sqrt(jnp.sum(v2.astype(jnp.float32) ** 2, axis=(1, 2))).astype(dtype)
    b2 = jax.random.normal(ks[3], (out_channels,), dtype) * 0.1
    params = {"v1": v1, "g1": g1, "b1": b1, "v2": v2, "g2": g2, "b2": b2,
              "in_channels": in_channels, "out_channels": out_channels}
    if in_channels != out_channels:
        vb = jax.random.normal(ks[4], (out_channels, in_channels, 1), dtype) * 0.3
        gb = jnp.sqrt(jnp.sum(vb.astype(jnp.float32) ** 2, axis=(1, 2))).astype(dtype)
        bb = jax.random.normal(ks[5], (out_channels,), dtype) * 0.1
        params.update({"vb": vb, "gb": gb, "bb": bb})
    return params


def prepare_resblock_weights(params, dtype=jnp.float32):
    """Hoist weight_norm, bias fusion and channel padding off the forward path.

    * weights stored in `dtype` (f32 or bf16 storage path), biases kept in f32,
    * bridge bias folded into the net's second bias (one fewer VPU add + DMA),
    * C_in / C_out zero-padded to the sublane pack (8 f32 / 16 bf16) so vregs
      stay dense; the wrapper slices the padding back off the output.
    """
    c_in = int(params["in_channels"])
    c_out = int(params["out_channels"])
    itemsize = jnp.dtype(dtype).itemsize
    pack = max(8, 32 // itemsize)
    c_in_p = _round_up(c_in, pack)
    c_out_p = _round_up(c_out, pack)

    w1 = jnp.squeeze(_weight_norm(params["v1"], params["g1"]), -1)   # (C_out, C_in) f32
    w2 = jnp.squeeze(_weight_norm(params["v2"], params["g2"]), -1)   # (C_out, C_out) f32
    b1 = params["b1"].astype(jnp.float32)
    b2 = params["b2"].astype(jnp.float32)

    has_bridge = "vb" in params
    if has_bridge:
        wb = jnp.squeeze(_weight_norm(params["vb"], params["gb"]), -1)
        b2 = b2 + params["bb"].astype(jnp.float32)   # fuse bridge bias into net bias

    def pad_w(w, rows, cols):
        return _pad_to(_pad_to(w, 0, rows), 1, cols).astype(dtype)

    weights = {
        "w1": pad_w(w1, c_out_p, c_in_p),
        "b1": _pad_to(b1, 0, c_out_p).reshape(c_out_p, 1),
        "w2": pad_w(w2, c_out_p, c_out_p),
        "b2": _pad_to(b2, 0, c_out_p).reshape(c_out_p, 1),
        "c_in": c_in, "c_out": c_out, "c_in_p": c_in_p, "c_out_p": c_out_p,
        "dtype": jnp.dtype(dtype),
    }
    if has_bridge:
        weights["wb"] = pad_w(wb, c_out_p, c_in_p)
    return weights


# ---------------------------------------------------------------------------
# Forward wrapper
# ---------------------------------------------------------------------------
def res_block_linear(x, weights):
    """x: (B, C_in, T) -> (B, C_out, T), PyTorch NCW layout throughout.

    Output dtype matches the storage dtype chosen in prepare_resblock_weights
    (f32 or bf16); accumulation is always f32.
    """
    B, C_in, T = x.shape
    c_in, c_out = weights["c_in"], weights["c_out"]
    c_in_p, c_out_p = weights["c_in_p"], weights["c_out_p"]
    dtype = weights["dtype"]
    itemsize = dtype.itemsize
    assert C_in == c_in, "input channel count does not match prepared weights"
    has_bridge = "wb" in weights
    if not has_bridge:
        assert c_in_p == c_out_p, "identity bridge requires in_channels == out_channels"

    # Pad time to a 128-multiple (lane-dense tiles) and channels to the sublane
    # pack; one pad off the hot loop, sliced off after the call.
    t_pad = _round_up(T, 128)
    xc = x.astype(dtype)
    if c_in_p != C_in or t_pad != T:
        xc = jnp.pad(xc, ((0, 0), (0, c_in_p - C_in), (0, t_pad - T)))

    vmem_budget = _vmem_budget_bytes()
    tt = _choose_time_tile(t_pad, B, c_in_p, c_out_p, itemsize, has_bridge, vmem_budget)
    grid = (B, _cdiv(t_pad, tt))   # ragged tail tiles are fine: time columns never mix

    # Activations: batch squeezed, channels on sublanes, time tile on lanes.
    x_spec = pl.BlockSpec((None, c_in_p, tt), lambda b, t: (b, 0, t))
    o_spec = pl.BlockSpec((None, c_out_p, tt), lambda b, t: (b, 0, t))
    # Weights / biases: full arrays, constant index_map -> stay VMEM resident.
    wspec = lambda shape: pl.BlockSpec(shape, lambda b, t: (0, 0))

    bridge_flops = (2 * c_in_p * c_out_p) if has_bridge else 0
    cost = pl.CostEstimate(
        flops=B * t_pad * (2 * c_in_p * c_out_p + 2 * c_out_p * c_out_p + bridge_flops),
        transcendentals=0,
        bytes_accessed=itemsize * (B * t_pad * (c_in_p + c_out_p)
                                   + c_out_p * (c_in_p + c_out_p)
                                   + (c_out_p * c_in_p if has_bridge else 0))
                       + 4 * 2 * c_out_p,
    )

    if has_bridge:
        kernel = _resblock_bridge_kernel
        args = (xc, weights["w1"], weights["b1"], weights["w2"], weights["b2"],
                weights["wb"])
        in_specs = [x_spec,
                    wspec((c_out_p, c_in_p)), wspec((c_out_p, 1)),
                    wspec((c_out_p, c_out_p)), wspec((c_out_p, 1)),
                    wspec((c_out_p, c_in_p))]
    else:
        kernel = _resblock_identity_kernel
        args = (xc, weights["w1"], weights["b1"], weights["w2"], weights["b2"])
        in_specs = [x_spec,
                    wspec((c_out_p, c_in_p)), wspec((c_out_p, 1)),
                    wspec((c_out_p, c_out_p)), wspec((c_out_p, 1))]

    out = pl.pallas_call(
        kernel,
        out_shape=jax.ShapeDtypeStruct((B, c_out_p, t_pad), dtype),
        grid_spec=pltpu.PrefetchScalarGridSpec(
            num_scalar_prefetch=0,
            grid=grid,
            in_specs=in_specs,
            out_specs=o_spec,
        ),
        compiler_params=pltpu.CompilerParams(
            dimension_semantics=("parallel", "parallel"),   # megacore sharding on v7x
            vmem_limit_bytes=vmem_budget,                   # generation-aware limit
        ),
        cost_estimate=cost,
    )(*args)

    if c_out_p != c_out or t_pad != T:
        out = out[:, :c_out, :T]
    return out


# ---------------------------------------------------------------------------
# Pure-JAX reference
# ---------------------------------------------------------------------------
def _reference(x, params):
    w1 = jnp.squeeze(_weight_norm(params["v1"], params["g1"]), -1)
    w2 = jnp.squeeze(_weight_norm(params["v2"], params["g2"]), -1)
    h = jax.nn.relu(x)
    h = jnp.einsum("oi,bit->bot", w1, h) + params["b1"][None, :, None]
    h = jax.nn.relu(h)
    y = jnp.einsum("oi,bit->bot", w2, h) + params["b2"][None, :, None]
    if "vb" in params:
        wb = jnp.squeeze(_weight_norm(params["vb"], params["gb"]), -1)
        xb = jnp.einsum("oi,bit->bot", wb, x) + params["bb"][None, :, None]
    else:
        xb = x
    return xb + y


if __name__ == "__main__":
    key = jax.random.PRNGKey(0)
    k_x, k_p = jax.random.split(key)

    B, C_in, C_out, T = 2, 4, 8, 16          # small shapes; bridge conv is active
    x = jax.random.normal(k_x, (B, C_in, T), jnp.float32)
    params = init_resblock_params(k_p, C_in, C_out)
    ref = _reference(x, params)

    # f32 storage path.
    w_f32 = prepare_resblock_weights(params, dtype=jnp.float32)
    out = jax.block_until_ready(res_block_linear(x, w_f32))
    assert out.shape == (B, C_out, T)
    assert jnp.allclose(out, ref, atol=1e-4, rtol=1e-4), "f32 mismatch vs reference"

    # bf16 storage path (halves HBM traffic on this mem-bound op); f32 accumulation.
    w_bf16 = prepare_resblock_weights(params, dtype=jnp.bfloat16)
    out_bf = jax.block_until_ready(res_block_linear(x, w_bf16))
    assert out_bf.shape == (B, C_out, T)
    assert jnp.allclose(out_bf.astype(jnp.float32), ref, atol=6e-2, rtol=6e-2), \
        "bf16 mismatch vs reference"

    # Identity-bridge path (in_channels == out_channels) -> 2-matmul kernel variant.
    params_id = init_resblock_params(k_p, C_out, C_out)
    x_id = jax.random.normal(k_x, (B, C_out, T), jnp.float32)
    w_id = prepare_resblock_weights(params_id, dtype=jnp.float32)
    out_id = jax.block_until_ready(res_block_linear(x_id, w_id))
    assert out_id.shape == (B, C_out, T)
    assert jnp.allclose(out_id, _reference(x_id, params_id), atol=1e-4, rtol=1e-4), \
        "identity-bridge mismatch"

    print("KERNEL_OK")
</pallas_src>

<mosaic_0001>
module attributes {stable_mosaic.version = 11 : i64} {
  func.func @_resblock_bridge_kernel(%arg0: i32, %arg1: i32, %arg2: memref<1x8x128xf32, #tpu.memory_space<vmem>>, %arg3: memref<8x8xf32, #tpu.memory_space<vmem>>, %arg4: memref<8x1xf32, #tpu.memory_space<vmem>>, %arg5: memref<8x8xf32, #tpu.memory_space<vmem>>, %arg6: memref<8x1xf32, #tpu.memory_space<vmem>>, %arg7: memref<8x8xf32, #tpu.memory_space<vmem>>, %arg8: memref<1x8x128xf32, #tpu.memory_space<vmem>>) attributes {dimension_semantics = [#tpu.dimension_semantics<parallel>, #tpu.dimension_semantics<parallel>], iteration_bounds = array<i64: 2, 1>, scalar_prefetch = 0 : i64, scratch_operands = 0 : i64, tpu.core_type = #tpu.core_type<tc>, window_params = [{transform_indices = @transform_0, window_bounds = array<i64: 1, 8, 128>}, {pipeline_mode = #tpu.pipeline_mode<synchronous>, transform_indices = @transform_1, window_bounds = array<i64: 8, 8>}, {pipeline_mode = #tpu.pipeline_mode<synchronous>, transform_indices = @transform_2, window_bounds = array<i64: 8, 1>}, {pipeline_mode = #tpu.pipeline_mode<synchronous>, transform_indices = @transform_3, window_bounds = array<i64: 8, 8>}, {pipeline_mode = #tpu.pipeline_mode<synchronous>, transform_indices = @transform_4, window_bounds = array<i64: 8, 1>}, {pipeline_mode = #tpu.pipeline_mode<synchronous>, transform_indices = @transform_5, window_bounds = array<i64: 8, 8>}, {transform_indices = @transform_6, window_bounds = array<i64: 1, 8, 128>}]} {
    %c0 = arith.constant 0 : index
    %c0_0 = arith.constant 0 : index
    %c0_1 = arith.constant 0 : index
    %0 = vector.load %arg2[%c0, %c0_0, %c0_1] : memref<1x8x128xf32, #tpu.memory_space<vmem>>, vector<1x8x128xf32>
    %1 = vector.shape_cast %0 : vector<1x8x128xf32> to vector<8x128xf32>
    %cst = arith.constant 0.000000e+00 : f32
    %2 = vector.broadcast %cst : f32 to vector<8x128xf32>
    %3 = arith.maximumf %1, %2 : vector<8x128xf32>
    %c0_2 = arith.constant 0 : index
    %c0_3 = arith.constant 0 : index
    %4 = vector.load %arg3[%c0_2, %c0_3] : memref<8x8xf32, #tpu.memory_space<vmem>>, vector<8x8xf32>
    %cst_4 = arith.constant dense<0.000000e+00> : vector<8x128xf32>
    %5 = tpu.matmul %4, %3, %cst_4 {dimension_numbers = #tpu.dot_dimension_numbers<[1], [0], [0], [1], [0, 0, 1, 1], [], []>} : vector<8x8xf32>, vector<8x128xf32>, vector<8x128xf32> -> vector<8x128xf32>
    %c0_5 = arith.constant 0 : index
    %c0_6 = arith.constant 0 : index
    %6 = vector.load %arg4[%c0_5, %c0_6] : memref<8x1xf32, #tpu.memory_space<vmem>>, vector<8x1xf32>
    %7 = vector.broadcast %6 : vector<8x1xf32> to vector<8x128xf32>
    %8 = arith.addf %5, %7 : vector<8x128xf32>
    %cst_7 = arith.constant 0.000000e+00 : f32
    %9 = vector.broadcast %cst_7 : f32 to vector<8x128xf32>
    %10 = arith.maximumf %8, %9 : vector<8x128xf32>
    %c0_8 = arith.constant 0 : index
    %c0_9 = arith.constant 0 : index
    %11 = vector.load %arg5[%c0_8, %c0_9] : memref<8x8xf32, #tpu.memory_space<vmem>>, vector<8x8xf32>
    %cst_10 = arith.constant dense<0.000000e+00> : vector<8x128xf32>
    %12 = tpu.matmul %11, %10, %cst_10 {dimension_numbers = #tpu.dot_dimension_numbers<[1], [0], [0], [1], [0, 0, 1, 1], [], []>} : vector<8x8xf32>, vector<8x128xf32>, vector<8x128xf32> -> vector<8x128xf32>
    %c0_11 = arith.constant 0 : index
    %c0_12 = arith.constant 0 : index
    %13 = vector.load %arg6[%c0_11, %c0_12] : memref<8x1xf32, #tpu.memory_space<vmem>>, vector<8x1xf32>
    %14 = vector.broadcast %13 : vector<8x1xf32> to vector<8x128xf32>
    %15 = arith.addf %12, %14 : vector<8x128xf32>
    %c0_13 = arith.constant 0 : index
    %c0_14 = arith.constant 0 : index
    %16 = vector.load %arg7[%c0_13, %c0_14] : memref<8x8xf32, #tpu.memory_space<vmem>>, vector<8x8xf32>
    %cst_15 = arith.constant dense<0.000000e+00> : vector<8x128xf32>
    %17 = tpu.matmul %16, %1, %cst_15 {dimension_numbers = #tpu.dot_dimension_numbers<[1], [0], [0], [1], [0, 0, 1, 1], [], []>} : vector<8x8xf32>, vector<8x128xf32>, vector<8x128xf32> -> vector<8x128xf32>
    %18 = arith.addf %17, %15 : vector<8x128xf32>
    %c0_16 = arith.constant 0 : index
    %c0_17 = arith.constant 0 : index
    %c0_18 = arith.constant 0 : index
    %19 = vector.load %arg8[%c0_16, %c0_17, %c0_18] : memref<1x8x128xf32, #tpu.memory_space<vmem>>, vector<1x8x128xf32>
    %20 = vector.shape_cast %19 : vector<1x8x128xf32> to vector<8x128xf32>
    %21 = vector.shape_cast %18 : vector<8x128xf32> to vector<1x8x128xf32>
    tpu.vector_store %arg8[%c0_16, %c0_17, %c0_18], %21 {strides = array<i32>} : memref<1x8x128xf32, #tpu.memory_space<vmem>>, vector<1x8x128xf32>,
    return
  }
  func.func @transform_0(%arg0: i32, %arg1: i32) -> (i32, i32, i32) {
    %c0_i32 = arith.constant 0 : i32
    %c0_i32_0 = arith.constant 0 : i32
    return %arg0, %c0_i32, %arg1 : i32, i32, i32
  }
  func.func @transform_1(%arg0: i32, %arg1: i32) -> (i32, i32) {
    %c0_i32 = arith.constant 0 : i32
    %c0_i32_0 = arith.constant 0 : i32
    %c0_i32_1 = arith.constant 0 : i32
    return %c0_i32, %c0_i32_0 : i32, i32
  }
  func.func @transform_2(%arg0: i32, %arg1: i32) -> (i32, i32) {
    %c0_i32 = arith.constant 0 : i32
    %c0_i32_0 = arith.constant 0 : i32
    %c0_i32_1 = arith.constant 0 : i32
    return %c0_i32, %c0_i32_0 : i32, i32
  }
  func.func @transform_3(%arg0: i32, %arg1: i32) -> (i32, i32) {
    %c0_i32 = arith.constant 0 : i32
    %c0_i32_0 = arith.constant 0 : i32
    %c0_i32_1 = arith.constant 0 : i32
    return %c0_i32, %c0_i32_0 : i32, i32
  }
  func.func @transform_4(%arg0: i32, %arg1: i32) -> (i32, i32) {
    %c0_i32 = arith.constant 0 : i32
    %c0_i32_0 = arith.constant 0 : i32
    %c0_i32_1 = arith.constant 0 : i32
    return %c0_i32, %c0_i32_0 : i32, i32
  }
  func.func @transform_5(%arg0: i32, %arg1: i32) -> (i32, i32) {
    %c0_i32 = arith.constant 0 : i32
    %c0_i32_0 = arith.constant 0 : i32
    %c0_i32_1 = arith.constant 0 : i32
    return %c0_i32, %c0_i32_0 : i32, i32
  }
  func.func @transform_6(%arg0: i32, %arg1: i32) -> (i32, i32, i32) {
    %c0_i32 = arith.constant 0 : i32
    %c0_i32_0 = arith.constant 0 : i32
    return %arg0, %c0_i32, %arg1 : i32, i32, i32
  }
}

</mosaic_0001>

<llo_original>
// kernel: tpu_custom_call.1
$region0: #{tpu_custom_call.1}
  #allocation0 [shape = 'u32[]', space=smem, size = 0x4, offset = 0x4, fixed_abs, tag = 'smem constant byte address 0x4 - core index']
  #allocation1 [shape = 'u32[144,128]{1,0:T(1,128)}', space=vmem, size = 0x12000, scoped, tag = 'internal scratch']
  %s0 = inlined_call_operand.vmem [shape: f32[2,8,128], index: 0, kind: input, shape index: {}]
  %s1 = inlined_call_operand.hbm [shape: f32[8,8], index: 1, kind: input, shape index: {}]
  %s2 = inlined_call_operand.vmem [shape: f32[8,1], index: 2, kind: input, shape index: {}]
  %s3 = inlined_call_operand.vmem [shape: f32[8,8], index: 3, kind: input, shape index: {}]
  %s4 = inlined_call_operand.vmem [shape: f32[8,1], index: 4, kind: input, shape index: {}]
  %s5 = inlined_call_operand.vmem [shape: f32[8,8], index: 5, kind: input, shape index: {}]
  %s6 = inlined_call_operand.hbm [shape: f32[2,8,128], index: 6, kind: output, shape index: {}]
  %s7 = sld [smem:[#allocation0]]
  $region61: #{tpu_custom_call.1} parent=0
    _
  %s9 = ssub.s32 1, %s7
  %s10 = scalar_select 0, %s9, %s7
  $region1: #{tpu_custom_call.1} parent=0
    #allocation2 [shape = 'u8[4096]{0}', space=vmem, size = 0x1000, scoped, tag = 'input window, operand 1, single buffered']
    #allocation3 [shape = 's32[2]{0}', space=sflag, size = 0x8, scoped, tag = 'scoped memory for tpu_custom_call.1']
    #allocation4 [shape = 's32[2]{0}', space=sflag, size = 0x8, scoped, tag = 'scoped memory for tpu_custom_call.1']
    #allocation5 [shape = 'u8[8192]{0}', space=vmem, size = 0x2000, scoped, tag = 'output window, operand 0']
    %11 = vsyncpa [#allocation3], 0
    %12 = vsyncpa [#allocation4], 0
    %s13 = scalar_lea.sflag [#allocation4], 1
    %14 = vsyncpa %s13, 0
    loop: start=0, step=1, limit=4
    $region2: #{tpu_custom_call.1} parent=1 // loop_pre_header
      _
    $region3: #{tpu_custom_call.1} parent=1 // loop_header
      %s16 = sphi 0, %s20
      %p17 = scmp.ge.s32.totalorder %s16, 4
      %s23 = sphi 0, %s35
      %s24 = sphi 0, %s31
      %s25 = sphi 0, %s23
      %s26 = sphi 0, %s24
      %s27 = sphi 0, %s25
      %s28 = sphi 0, %s26
      %s40 = sphi 0, %s42
      %s43 = sphi 0, %s40
      %s44 = sphi 0, %s43
      %s60 = sphi 0, %s44
      %s64 = sphi 0, %s64
      %s66 = sphi 0, %s64
      %s67 = sphi 0, %s66
      %s81 = sphi 0, %s67
      %s85 = sphi 0, %s85
      %s87 = sphi 0, %s85
      %s88 = sphi 0, %s87
      %s102 = sphi 0, %s88
      %s106 = sphi 0, %s106
      %s108 = sphi 0, %s106
      %s109 = sphi 0, %s108
      %s123 = sphi 0, %s109
      %s127 = sphi 0, %s127
      %s129 = sphi 0, %s127
      %s130 = sphi 0, %s129
      %s144 = sphi 0, %s130
      %s148 = sphi 0, %s148
      %s150 = sphi 0, %s148
      %s151 = sphi 0, %s150
      %s165 = sphi 0, %s151
      %s173 = sphi 0, %s175
      %s176 = sphi 0, %s173
      %s177 = sphi 0, %s176
      %s193 = sphi 0, %s177
    $region4: #{tpu_custom_call.1} parent=1 // loop_header_branch
      %19 = sbr.rel (%p17) target = $region8
    $region5: #{tpu_custom_call.1} parent=1 // loop_body
      %s21 = ssub.s32 %s16, 1
      %s22 = ssub.s32 %s16, 2
      %s29 = sadd.s32 1, %s24
      %p30 = scmp.ge.s32.totalorder %s29, 1
      %s31 = scalar_select %p30, 0, %s29
      %s32 = sadd.s32 1, %s23
      %s33 = scalar_select %p30, %s32, %s23
      %p34 = scmp.ge.s32.totalorder %s33, 2
      %s35 = scalar_select %p34, 0, %s33
      %s36 = ssub.s32 %s23, %s35
      %s37 = ssub.s32 %s24, %s31
      %s38 = sor.u32 %s36, %s37
      %p39 = scmp.eq.s32.totalorder %s38, 0
      %s41 = sadd.s32 %s40, 1
      %s42 = scalar_select %p39, %s40, %s41
      %p45 = pneg %p39
      %p46 = scmp.eq.s32.totalorder %s16, 1
      %p47 = por %p45, %p46
      %p48 = scmp.ne.s32.totalorder %s40, %s43
      %p49 = scmp.eq.s32.totalorder %s16, 0
      %p50 = por %p48, %p49
      %p51 = scmp.ne.s32.totalorder %s40, %s43
      %p52 = scmp.eq.s32.totalorder %s21, 1
      %p53 = por %p51, %p52
      %p54 = scmp.ne.s32.totalorder %s43, %s44
      %p55 = scmp.eq.s32.totalorder %s21, 0
      %p56 = por %p54, %p55
      %p57 = scmp.ne.s32.totalorder %s43, %s44
      %p58 = scmp.eq.s32.totalorder %s22, 1
      %p59 = por %p57, %p58
      %p61 = scmp.ne.s32.totalorder %s44, %s60
      %p62 = scmp.eq.s32.totalorder %s22, 0
      %p63 = por %p61, %p62
      %s65 = sadd.s32 %s64, 1
      %p68 = scmp.eq.s32.totalorder %s16, 1
      %p69 = scmp.ne.s32.totalorder %s64, %s66
      %p70 = scmp.eq.s32.totalorder %s16, 0
      %p71 = por %p69, %p70
      %p72 = scmp.ne.s32.totalorder %s64, %s66
      %p73 = scmp.eq.s32.totalorder %s21, 1
      %p74 = por %p72, %p73
      %p75 = scmp.ne.s32.totalorder %s66, %s67
      %p76 = scmp.eq.s32.totalorder %s21, 0
      %p77 = por %p75, %p76
      %p78 = scmp.ne.s32.totalorder %s66, %s67
      %p79 = scmp.eq.s32.totalorder %s22, 1
      %p80 = por %p78, %p79
      %p82 = scmp.ne.s32.totalorder %s67, %s81
      %p83 = scmp.eq.s32.totalorder %s22, 0
      %p84 = por %p82, %p83
      %s86 = sadd.s32 %s85, 1
      %p89 = scmp.eq.s32.totalorder %s16, 1
      %p90 = scmp.ne.s32.totalorder %s85, %s87
      %p91 = scmp.eq.s32.totalorder %s16, 0
      %p92 = por %p90, %p91
      %p93 = scmp.ne.s32.totalorder %s85, %s87
      %p94 = scmp.eq.s32.totalorder %s21, 1
      %p95 = por %p93, %p94
      %p96 = scmp.ne.s32.totalorder %s87, %s88
      %p97 = scmp.eq.s32.totalorder %s21, 0
      %p98 = por %p96, %p97
      %p99 = scmp.ne.s32.totalorder %s87, %s88
      %p100 = scmp.eq.s32.totalorder %s22, 1
      %p101 = por %p99, %p100
      %p103 = scmp.ne.s32.totalorder %s88, %s102
      %p104 = scmp.eq.s32.totalorder %s22, 0
      %p105 = por %p103, %p104
      %s107 = sadd.s32 %s106, 1
      %p110 = scmp.eq.s32.totalorder %s16, 1
      %p111 = scmp.ne.s32.totalorder %s106, %s108
      %p112 = scmp.eq.s32.totalorder %s16, 0
      %p113 = por %p111, %p112
      %p114 = scmp.ne.s32.totalorder %s106, %s108
      %p115 = scmp.eq.s32.totalorder %s21, 1
      %p116 = por %p114, %p115
      %p117 = scmp.ne.s32.totalorder %s108, %s109
      %p118 = scmp.eq.s32.totalorder %s21, 0
      %p119 = por %p117, %p118
      %p120 = scmp.ne.s32.totalorder %s108, %s109
      %p121 = scmp.eq.s32.totalorder %s22, 1
      %p122 = por %p120, %p121
      %p124 = scmp.ne.s32.totalorder %s109, %s123
      %p125 = scmp.eq.s32.totalorder %s22, 0
      %p126 = por %p124, %p125
      %s128 = sadd.s32 %s127, 1
      %p131 = scmp.eq.s32.totalorder %s16, 1
      %p132 = scmp.ne.s32.totalorder %s127, %s129
      %p133 = scmp.eq.s32.totalorder %s16, 0
      %p134 = por %p132, %p133
      %p135 = scmp.ne.s32.totalorder %s127, %s129
      %p136 = scmp.eq.s32.totalorder %s21, 1
      %p137 = por %p135, %p136
      %p138 = scmp.ne.s32.totalorder %s129, %s130
      %p139 = scmp.eq.s32.totalorder %s21, 0
      %p140 = por %p138, %p139
      %p141 = scmp.ne.s32.totalorder %s129, %s130
      %p142 = scmp.eq.s32.totalorder %s22, 1
      %p143 = por %p141, %p142
      %p145 = scmp.ne.s32.totalorder %s130, %s144
      %p146 = scmp.eq.s32.totalorder %s22, 0
      %p147 = por %p145, %p146
      %s149 = sadd.s32 %s148, 1
      %p152 = scmp.eq.s32.totalorder %s16, 1
      %p153 = scmp.ne.s32.totalorder %s148, %s150
      %p154 = scmp.eq.s32.totalorder %s16, 0
      %p155 = por %p153, %p154
      %p156 = scmp.ne.s32.totalorder %s148, %s150
      %p157 = scmp.eq.s32.totalorder %s21, 1
      %p158 = por %p156, %p157
      %p159 = scmp.ne.s32.totalorder %s150, %s151
      %p160 = scmp.eq.s32.totalorder %s21, 0
      %p161 = por %p159, %p160
      %p162 = scmp.ne.s32.totalorder %s150, %s151
      %p163 = scmp.eq.s32.totalorder %s22, 1
      %p164 = por %p162, %p163
      %p166 = scmp.ne.s32.totalorder %s151, %s165
      %p167 = scmp.eq.s32.totalorder %s22, 0
      %p168 = por %p166, %p167
      %s169 = ssub.s32 %s23, %s35
      %s170 = ssub.s32 %s24, %s31
      %s171 = sor.u32 %s169, %s170
      %p172 = scmp.eq.s32.totalorder %s171, 0
      %s174 = sadd.s32 %s173, 1
      %s175 = scalar_select %p172, %s173, %s174
      %p178 = pneg %p172
      %p179 = scmp.eq.s32.totalorder %s16, 1
      %p180 = por %p178, %p179
      %p181 = scmp.ne.s32.totalorder %s173, %s176
      %p182 = scmp.eq.s32.totalorder %s16, 0
      %p183 = por %p181, %p182
      %p184 = scmp.ne.s32.totalorder %s173, %s176
      %p185 = scmp.eq.s32.totalorder %s21, 1
      %p186 = por %p184, %p185
      %p187 = scmp.ne.s32.totalorder %s176, %s177
      %p188 = scmp.eq.s32.totalorder %s21, 0
      %p189 = por %p187, %p188
      %p190 = scmp.ne.s32.totalorder %s176, %s177
      %p191 = scmp.eq.s32.totalorder %s22, 1
      %p192 = por %p190, %p191
      %p194 = scmp.ne.s32.totalorder %s177, %s193
      %p195 = scmp.eq.s32.totalorder %s22, 0
      %p196 = por %p194, %p195
      %p197 = scmp.le.s32.totalorder 1, %s16
      %p198 = scmp.lt.s32.totalorder %s16, 3
      %p199 = pnand %p197, %p198
      %p200 = pneg %p199
      // Predicated region
      $region9: #{tpu_custom_call.1} parent=5 // pred_check
        _
      $region10: #{tpu_custom_call.1} parent=5 // pred_check_branch
        %202 = sbr.rel (%p199) target = $region12
      $region11: #{tpu_custom_call.1} parent=5 // pred_region
        %s203 = ssub.s32 %s16, 1
        // Predicated region
        $region13: #{tpu_custom_call.1} parent=11 // pred_check
          %p204 = pneg %p77
        $region14: #{tpu_custom_call.1} parent=11 // pred_check_branch
          %206 = sbr.rel (%p204) target = $region16
        $region15: #{tpu_custom_call.1} parent=11 // pred_region
          %s208 = ssub.s32 128, 128
          %209 = vsyncadd [#allocation3], %s208
          %s211 = sshll.u32 [#allocation2], 4
          %s212 = int_to_ptr.vmem [resolvable:$true] %s211
          %214 = dma.hbm_to_vmem [thread:$0]  %s1, 128, %s212, [#allocation3]
        $region16: #{tpu_custom_call.1} parent=11 // pred_fallthru
          _
        // Predicated region
        $region17: #{tpu_custom_call.1} parent=11 // pred_check
          %p215 = pneg %p98
        $region18: #{tpu_custom_call.1} parent=11 // pred_check_branch
          %217 = sbr.rel (%p215) target = $region20
        $region19: #{tpu_custom_call.1} parent=11 // pred_region
          _
        $region20: #{tpu_custom_call.1} parent=11 // pred_fallthru
          _
        // Predicated region
        $region21: #{tpu_custom_call.1} parent=11 // pred_check
          %p218 = pneg %p119
        $region22: #{tpu_custom_call.1} parent=11 // pred_check_branch
          %220 = sbr.rel (%p218) target = $region24
        $region23: #{tpu_custom_call.1} parent=11 // pred_region
          _
        $region24: #{tpu_custom_call.1} parent=11 // pred_fallthru
          _
        // Predicated region
        $region25: #{tpu_custom_call.1} parent=11 // pred_check
          %p221 = pneg %p140
        $region26: #{tpu_custom_call.1} parent=11 // pred_check_branch
          %223 = sbr.rel (%p221) target = $region28
        $region27: #{tpu_custom_call.1} parent=11 // pred_region
          _
        $region28: #{tpu_custom_call.1} parent=11 // pred_fallthru
          _
        // Predicated region
        $region29: #{tpu_custom_call.1} parent=11 // pred_check
          %p224 = pneg %p161
        $region30: #{tpu_custom_call.1} parent=11 // pred_check_branch
          %226 = sbr.rel (%p224) target = $region32
        $region31: #{tpu_custom_call.1} parent=11 // pred_region
          _
        $region32: #{tpu_custom_call.1} parent=11 // pred_fallthru
          _
      $region12: #{tpu_custom_call.1} parent=5 // pred_fallthru
        _
      %p227 = scmp.lt.s32.totalorder %s16, 2
      // Predicated region
      $region33: #{tpu_custom_call.1} parent=5 // pred_check
        %p228 = pneg %p227
      $region34: #{tpu_custom_call.1} parent=5 // pred_check_branch
        %230 = sbr.rel (%p228) target = $region36
      $region35: #{tpu_custom_call.1} parent=5 // pred_region
        // Predicated region
        $region37: #{tpu_custom_call.1} parent=35 // pred_check
          %p231 = pneg %p50
        $region38: #{tpu_custom_call.1} parent=35 // pred_check_branch
          %233 = sbr.rel (%p231) target = $region40
        $region39: #{tpu_custom_call.1} parent=35 // pred_region
          %p234 = scmp.lt.s32.totalorder %s23, 1
          %s235 = scalar_select %p234, %s23, 1
          %p236 = scmp.lt.s32.totalorder %s24, 0
          %s237 = scalar_select %p236, %s24, 0
          %s238 = sadd.s32 %s237, %s235
          %s239 = smul.addr %s238, 8
          %s240 = scalar_lea.vmem %s0, %s239
        $region40: #{tpu_custom_call.1} parent=35 // pred_fallthru
          _
      $region36: #{tpu_custom_call.1} parent=5 // pred_fallthru
        _
      %p241 = scmp.le.s32.totalorder 1, %s16
      %p242 = scmp.lt.s32.totalorder %s16, 3
      %p243 = pnand %p241, %p242
      %p244 = pneg %p243
      // Predicated region
      $region41: #{tpu_custom_call.1} parent=5 // pred_check
        _
      $region42: #{tpu_custom_call.1} parent=5 // pred_check_branch
        %246 = sbr.rel (%p243) target = $region44
      $region43: #{tpu_custom_call.1} parent=5 // pred_region
        %s247 = ssub.s32 %s16, 1
        // Predicated region
        $region45: #{tpu_custom_call.1} parent=43 // pred_check
          %p248 = pneg %p77
        $region46: #{tpu_custom_call.1} parent=43 // pred_check_branch
          %250 = sbr.rel (%p248) target = $region48
        $region47: #{tpu_custom_call.1} parent=43 // pred_region
          %251 = dma.done [#allocation3], 128
        $region48: #{tpu_custom_call.1} parent=43 // pred_fallthru
          _
        %p252 = scmp.lt.s32.totalorder %s25, 1
        %s253 = scalar_select %p252, %s25, 1
        %p254 = scmp.lt.s32.totalorder %s26, 0
        %s255 = scalar_select %p254, %s26, 0
        %s256 = sadd.s32 %s255, %s253
        %s257 = smul.addr %s256, 8
        %s258 = scalar_lea.vmem %s0, %s257
        %p259 = pneg %p56
        %p260 = pneg %p53
        %p261 = pneg %p77
        %p262 = pneg %p74
        %p263 = pneg %p98
        %p264 = pneg %p95
        %p265 = pneg %p119
        %p266 = pneg %p116
        %p267 = pneg %p140
        %p268 = pneg %p137
        %p269 = pneg %p161
        %p270 = pneg %p158
        %p271 = pneg %p189
        %p272 = pneg %p186
        %s273 = sand.u32 %s176, 1
        %s274 = scalar_lea.sflag [#allocation4], %s273
        %s275 = sand.u32 %s176, 1
        %s276 = smul.addr %s275, 8
        %s277 = scalar_lea.vmem [#allocation5], %s276
        %p278 = scmp.lt.s32.totalorder %s25, 1
        %s279 = scalar_select %p278, %s25, 1
        %p280 = scmp.lt.s32.totalorder %s26, 0
        %s281 = scalar_select %p280, %s26, 0
        %s282 = sadd.s32 %s281, %s279
        %s283 = smul.addr %s282, 8
        %s284 = scalar_lea.vmem %s0, %s283
        %v285 = vld [vmem:[%s284] sm:$0xff]
        %v286 = vmax.f32 %v285, 0.0
        %v287 = vld [vmem:[#allocation2] sm:$0xff]
        %v288 = vld [vmem:[%s2] sm:$0xff]
        %290 = vset.pattern.permute.xlu0 0
        %291 = vperm.xlu0 %290, %v288
        %v292 = vpop.permute.xlu0 %291
        %vm294 = vcmask 64512
        %v296 = vsel %vm294, %v287, 0
        %298 = vmatprep.subr.mxu0 0.0
        %299 = vmatpush1.msra.mxu0 %v286
        %300 = vmatprep.subr.mxu0 0.0
        %301 = vmatpush1.msra.mxu0 0.0
        %302 = vmatprep.subr.mxu0 0.0
        %303 = vmatpush1.msra.mxu0 0.0
        %304 = vmatprep.subr.mxu0 0.0
        %305 = vmatpush1.msra.mxu0 0.0
        %306 = vmatprep.subr.mxu0 0.0
        %307 = vmatpush1.msra.mxu0 0.0
        %308 = vmatprep.subr.mxu0 0.0
        %309 = vmatpush1.msra.mxu0 0.0
        %310 = vmatprep.subr.mxu0 0.0
        %311 = vmatpush1.msra.mxu0 0.0
        %312 = vmatprep.subr.mxu0 0.0
        %313 = vmatpush1.msra.mxu0 0.0
        %314 = vmatprep.subr.mxu0 0.0
        %315 = vmatpush1.msra.mxu0 0.0
        %316 = vmatprep.subr.mxu0 0.0
        %317 = vmatpush1.msra.mxu0 0.0
        %318 = vmatprep.subr.mxu0 0.0
        %319 = vmatpush1.msra.mxu0 0.0
        %320 = vmatprep.subr.mxu0 0.0
        %321 = vmatpush1.msra.mxu0 0.0
        %322 = vmatprep.subr.mxu0 0.0
        %323 = vmatpush1.msra.mxu0 0.0
        %324 = vmatprep.subr.mxu0 0.0
        %325 = vmatpush1.msra.mxu0 0.0
        %326 = vmatprep.subr.mxu0 0.0
        %327 = vmatpush1.msra.mxu0 0.0
        %328 = vmatprep.subr.mxu0 0.0
        %329 = vmatpush1.msra.mxu0 0.0
        %330 = vmatprep.subr.mxu0 0.0
        %331 = vmatpush1.msra.mxu0 0.0
        %332 = vmatprep.subr.mxu0 0.0
        %333 = vmatpush1.msra.mxu0 0.0
        %334 = vmatprep.subr.mxu0 0.0
        %335 = vmatpush1.msra.mxu0 0.0
        %336 = vmatprep.subr.mxu0 0.0
        %337 = vmatpush1.msra.mxu0 0.0
        %338 = vmatprep.subr.mxu0 0.0
        %339 = vmatpush1.msra.mxu0 0.0
        %340 = vmatprep.subr.mxu0 0.0
        %341 = vmatpush1.msra.mxu0 0.0
        %342 = vmatprep.subr.mxu0 0.0
        %343 = vmatpush1.msra.mxu0 0.0
        %344 = vmatprep.subr.mxu0 0.0
        %345 = vmatpush1.msra.mxu0 0.0
        %346 = vmatprep.subr.mxu0 0.0
        %347 = vmatpush1.msra.mxu0 0.0
        %348 = vmatprep.subr.mxu0 0.0
        %349 = vmatpush1.msra.mxu0 0.0
        %350 = vmatprep.subr.mxu0 0.0
        %351 = vmatpush1.msra.mxu0 0.0
        %352 = vmatprep.subr.mxu0 0.0
        %353 = vmatpush1.msra.mxu0 0.0
        %354 = vmatprep.subr.mxu0 0.0
        %355 = vmatpush1.msra.mxu0 0.0
        %356 = vmatprep.subr.mxu0 0.0
        %357 = vmatpush1.msra.mxu0 0.0
        %358 = vmatprep.subr.mxu0 0.0
        %359 = vmatpush1.msra.mxu0 0.0
        %360 = vmatprep.subr.mxu0 0.0
        %361 = vmatpush1.msra.mxu0 0.0
        %362 = vmatprep.mubr.f32.mxu0 0.0
        %363 = vmatmul.mubr.f32.gmra.mrb[0].mxu0 %v296
        %v364 = vpop.f32.mrb[0].mxu0
        %v365 = vadd.f32 %v292, %v364
        %v366 = vpop.f32.mrb[0].mxu0
        %367 = vdwg.mxu0
        %v368 = vmax.f32 %v365, 0.0
        %v369 = vld [vmem:[%s3] sm:$0xff]
        %v370 = vld [vmem:[%s4] sm:$0xff]
        %372 = vset.pattern.permute.xlu0 0
        %373 = vperm.xlu0 %372, %v370
        %v374 = vpop.permute.xlu0 %373
        %v377 = vsel %vm294, %v369, 0
        %379 = vmatprep.subr.mxu0 0.0
        %380 = vmatpush1.msra.mxu0 %v368
        %381 = vmatprep.subr.mxu0 0.0
        %382 = vmatpush1.msra.mxu0 0.0
        %383 = vmatprep.subr.mxu0 0.0
        %384 = vmatpush1.msra.mxu0 0.0
        %385 = vmatprep.subr.mxu0 0.0
        %386 = vmatpush1.msra.mxu0 0.0
        %387 = vmatprep.subr.mxu0 0.0
        %388 = vmatpush1.msra.mxu0 0.0
        %389 = vmatprep.subr.mxu0 0.0
        %390 = vmatpush1.msra.mxu0 0.0
        %391 = vmatprep.subr.mxu0 0.0
        %392 = vmatpush1.msra.mxu0 0.0
        %393 = vmatprep.subr.mxu0 0.0
        %394 = vmatpush1.msra.mxu0 0.0
        %395 = vmatprep.subr.mxu0 0.0
        %396 = vmatpush1.msra.mxu0 0.0
        %397 = vmatprep.subr.mxu0 0.0
        %398 = vmatpush1.msra.mxu0 0.0
        %399 = vmatprep.subr.mxu0 0.0
        %400 = vmatpush1.msra.mxu0 0.0
        %401 = vmatprep.subr.mxu0 0.0
        %402 = vmatpush1.msra.mxu0 0.0
        %403 = vmatprep.subr.mxu0 0.0
        %404 = vmatpush1.msra.mxu0 0.0
        %405 = vmatprep.subr.mxu0 0.0
        %406 = vmatpush1.msra.mxu0 0.0
        %407 = vmatprep.subr.mxu0 0.0
        %408 = vmatpush1.msra.mxu0 0.0
        %409 = vmatprep.subr.mxu0 0.0
        %410 = vmatpush1.msra.mxu0 0.0
        %411 = vmatprep.subr.mxu0 0.0
        %412 = vmatpush1.msra.mxu0 0.0
        %413 = vmatprep.subr.mxu0 0.0
        %414 = vmatpush1.msra.mxu0 0.0
        %415 = vmatprep.subr.mxu0 0.0
        %416 = vmatpush1.msra.mxu0 0.0
        %417 = vmatprep.subr.mxu0 0.0
        %418 = vmatpush1.msra.mxu0 0.0
        %419 = vmatprep.subr.mxu0 0.0
        %420 = vmatpush1.msra.mxu0 0.0
        %421 = vmatprep.subr.mxu0 0.0
        %422 = vmatpush1.msra.mxu0 0.0
        %423 = vmatprep.subr.mxu0 0.0
        %424 = vmatpush1.msra.mxu0 0.0
        %425 = vmatprep.subr.mxu0 0.0
        %426 = vmatpush1.msra.mxu0 0.0
        %427 = vmatprep.subr.mxu0 0.0
        %428 = vmatpush1.msra.mxu0 0.0
        %429 = vmatprep.subr.mxu0 0.0
        %430 = vmatpush1.msra.mxu0 0.0
        %431 = vmatprep.subr.mxu0 0.0
        %432 = vmatpush1.msra.mxu0 0.0
        %433 = vmatprep.subr.mxu0 0.0
        %434 = vmatpush1.msra.mxu0 0.0
        %435 = vmatprep.subr.mxu0 0.0
        %436 = vmatpush1.msra.mxu0 0.0
        %437 = vmatprep.subr.mxu0 0.0
        %438 = vmatpush1.msra.mxu0 0.0
        %439 = vmatprep.subr.mxu0 0.0
        %440 = vmatpush1.msra.mxu0 0.0
        %441 = vmatprep.subr.mxu0 0.0
        %442 = vmatpush1.msra.mxu0 0.0
        %443 = vmatprep.mubr.f32.mxu0 0.0
        %444 = vmatmul.mubr.f32.gmra.mrb[0].mxu0 %v377
        %v445 = vpop.f32.mrb[0].mxu0
        %v446 = vadd.f32 %v374, %v445
        %v447 = vpop.f32.mrb[0].mxu0
        %448 = vdwg.mxu0
        %v449 = vld [vmem:[%s5] sm:$0xff]
        %v451 = vsel %vm294, %v449, 0
        %453 = vmatprep.subr.mxu0 0.0
        %454 = vmatpush1.msra.mxu0 %v285
        %455 = vmatprep.subr.mxu0 0.0
        %456 = vmatpush1.msra.mxu0 0.0
        %457 = vmatprep.subr.mxu0 0.0
        %458 = vmatpush1.msra.mxu0 0.0
        %459 = vmatprep.subr.mxu0 0.0
        %460 = vmatpush1.msra.mxu0 0.0
        %461 = vmatprep.subr.mxu0 0.0
        %462 = vmatpush1.msra.mxu0 0.0
        %463 = vmatprep.subr.mxu0 0.0
        %464 = vmatpush1.msra.mxu0 0.0
        %465 = vmatprep.subr.mxu0 0.0
        %466 = vmatpush1.msra.mxu0 0.0
        %467 = vmatprep.subr.mxu0 0.0
        %468 = vmatpush1.msra.mxu0 0.0
        %469 = vmatprep.subr.mxu0 0.0
        %470 = vmatpush1.msra.mxu0 0.0
        %471 = vmatprep.subr.mxu0 0.0
        %472 = vmatpush1.msra.mxu0 0.0
        %473 = vmatprep.subr.mxu0 0.0
        %474 = vmatpush1.msra.mxu0 0.0
        %475 = vmatprep.subr.mxu0 0.0
        %476 = vmatpush1.msra.mxu0 0.0
        %477 = vmatprep.subr.mxu0 0.0
        %478 = vmatpush1.msra.mxu0 0.0
        %479 = vmatprep.subr.mxu0 0.0
        %480 = vmatpush1.msra.mxu0 0.0
        %481 = vmatprep.subr.mxu0 0.0
        %482 = vmatpush1.msra.mxu0 0.0
        %483 = vmatprep.subr.mxu0 0.0
        %484 = vmatpush1.msra.mxu0 0.0
        %485 = vmatprep.subr.mxu0 0.0
        %486 = vmatpush1.msra.mxu0 0.0
        %487 = vmatprep.subr.mxu0 0.0
        %488 = vmatpush1.msra.mxu0 0.0
        %489 = vmatprep.subr.mxu0 0.0
        %490 = vmatpush1.msra.mxu0 0.0
        %491 = vmatprep.subr.mxu0 0.0
        %492 = vmatpush1.msra.mxu0 0.0
        %493 = vmatprep.subr.mxu0 0.0
        %494 = vmatpush1.msra.mxu0 0.0
        %495 = vmatprep.subr.mxu0 0.0
        %496 = vmatpush1.msra.mxu0 0.0
        %497 = vmatprep.subr.mxu0 0.0
        %498 = vmatpush1.msra.mxu0 0.0
        %499 = vmatprep.subr.mxu0 0.0
        %500 = vmatpush1.msra.mxu0 0.0
        %501 = vmatprep.subr.mxu0 0.0
        %502 = vmatpush1.msra.mxu0 0.0
        %503 = vmatprep.subr.mxu0 0.0
        %504 = vmatpush1.msra.mxu0 0.0
        %505 = vmatprep.subr.mxu0 0.0
        %506 = vmatpush1.msra.mxu0 0.0
        %507 = vmatprep.subr.mxu0 0.0
        %508 = vmatpush1.msra.mxu0 0.0
        %509 = vmatprep.subr.mxu0 0.0
        %510 = vmatpush1.msra.mxu0 0.0
        %511 = vmatprep.subr.mxu0 0.0
        %512 = vmatpush1.msra.mxu0 0.0
        %513 = vmatprep.subr.mxu0 0.0
        %514 = vmatpush1.msra.mxu0 0.0
        %515 = vmatprep.subr.mxu0 0.0
        %516 = vmatpush1.msra.mxu0 0.0
        %517 = vmatprep.mubr.f32.mxu0 0.0
        %518 = vmatmul.mubr.f32.gmra.mrb[0].mxu0 %v451
        %v519 = vpop.f32.mrb[0].mxu0
        %v520 = vadd.f32 %v446, %v519
        %v521 = vpop.f32.mrb[0].mxu0
        %522 = vdwg.mxu0
        %523 = vst [vmem:[%s277] sm:$0xff] %v520
        %s524 = sand.u32 %s176, 1
        %s525 = scalar_lea.sflag [#allocation4], %s524
        %s526 = sand.u32 %s176, 1
        %s527 = smul.addr %s526, 8
        %s528 = scalar_lea.vmem [#allocation5], %s527
        // Predicated region
        $region49: #{tpu_custom_call.1} parent=43 // pred_check
          %p529 = pneg %p186
        $region50: #{tpu_custom_call.1} parent=43 // pred_check_branch
          %531 = sbr.rel (%p529) target = $region52
        $region51: #{tpu_custom_call.1} parent=43 // pred_region
          %s533 = ssub.s32 128, 128
          %534 = vsyncadd %s525, %s533
          %s535 = sadd.s32 %s26, %s25
          %s536 = smul.addr %s535, 128
          %s537 = scalar_lea.hbm %s6, %s536
          %s539 = sshll.u32 %s528, 4
          %s540 = int_to_ptr.vmem [resolvable:$true] %s539
          %542 = dma.vmem_to_hbm [thread:$0]  %s540, 128, %s537, %s525
        $region52: #{tpu_custom_call.1} parent=43 // pred_fallthru
          _
      $region44: #{tpu_custom_call.1} parent=5 // pred_fallthru
        _
      %p543 = scmp.le.s32.totalorder 2, %s16
      // Predicated region
      $region53: #{tpu_custom_call.1} parent=5 // pred_check
        %p544 = pneg %p543
      $region54: #{tpu_custom_call.1} parent=5 // pred_check_branch
        %546 = sbr.rel (%p544) target = $region56
      $region55: #{tpu_custom_call.1} parent=5 // pred_region
        %s547 = ssub.s32 %s16, 2
        // Predicated region
        $region57: #{tpu_custom_call.1} parent=55 // pred_check
          %p548 = pneg %p192
        $region58: #{tpu_custom_call.1} parent=55 // pred_check_branch
          %550 = sbr.rel (%p548) target = $region60
        $region59: #{tpu_custom_call.1} parent=55 // pred_region
          %s551 = sand.u32 %s177, 1
          %s552 = scalar_lea.sflag [#allocation4], %s551
          %s553 = sand.u32 %s177, 1
          %s554 = smul.addr %s553, 8
          %s555 = scalar_lea.vmem [#allocation5], %s554
          %556 = dma.done %s552, 128
        $region60: #{tpu_custom_call.1} parent=55 // pred_fallthru
          _
      $region56: #{tpu_custom_call.1} parent=5 // pred_fallthru
        _
    $region6: #{tpu_custom_call.1} parent=1 // loop_footer
      %s20 = sadd.s32 1, %s16
    $region7: #{tpu_custom_call.1} parent=1 // loop_footer_branch
      %15 = sbr.rel target = $region3
    $region8: #{tpu_custom_call.1} parent=1 // loop_exit
      _
    %557 = vsyncpa [#allocation3], 1
    %s558 = scalar_lea.sflag [#allocation3], 1
    %559 = vsyncpa %s558, 1
    %560 = vsyncpa [#allocation4], 1
    %s561 = scalar_lea.sflag [#allocation4], 1
    %562 = vsyncpa %s561, 1

</llo_original>
